<compile_context>
chip_gen: v6e
topology: v6e:2x2x1
jax: 0.10.0
libtpu: 0.0.40
codegen_flags: <defaults>
</compile_context>

<pallas_src>
import jax
import jax.numpy as jnp
from jax.experimental import pallas as pl
from jax.experimental.pallas import tpu as pltpu

_TARGET_TILE_BYTES = 4 << 20   # ~4 MiB activation tile (per perf review)
_VMEM_LIMIT_BYTES = 48 << 20   # headroom for 2 bufs x (x-tile + out-tile)


def _affine_kernel(alpha_ref, beta_ref, x_ref, o_ref):
    # alpha/beta: (1, D) params; x/o: (TR, D) row tiles.
    # Broadcasted FMA on the VPU; the cast guards any residual dtype promotion.
    o_ref[...] = (beta_ref[...] + alpha_ref[...] * x_ref[...]).astype(o_ref.dtype)


def _pick_tile_rows(n_rows: int, sub: int, row_bytes: int) -> int:
    """Rows per tile: ~_TARGET_TILE_BYTES, a multiple of `sub`, and dividing
    n_rows exactly when possible (even steps, no ragged masked writeback)."""
    target = max(sub, (_TARGET_TILE_BYTES // max(1, row_bytes)) // sub * sub)
    if target >= n_rows:
        return n_rows  # single full block == full array dim (always legal)
    # Largest multiple of `sub` <= target that divides n_rows exactly.
    for tr in range(target, sub - 1, -sub):
        if n_rows % tr == 0:
            return tr
    return target  # fall back to a ragged last block (Pallas masks it)


def affine(x: jax.Array, alpha: jax.Array, beta: jax.Array) -> jax.Array:
    """y = beta + alpha * x, alpha/beta of shape (1, 1, D), x of shape (B, N, D)."""
    B, N, D = x.shape
    assert alpha.shape == (1, 1, D) and beta.shape == (1, 1, D)
    out_dtype = x.dtype
    itemsize = jnp.dtype(out_dtype).itemsize

    # Flatten tokens: (B, N, D) -> (R, D).  Collapsing major dims only is a
    # free, layout-preserving view (no minor-dim reshape -> no hidden relayout).
    R = B * N
    x2 = x.reshape(R, D)
    # Pre-cast params so bf16 activations compute in bf16 on the VPU.
    a2 = alpha.reshape(1, D).astype(out_dtype)
    b2 = beta.reshape(1, D).astype(out_dtype)

    sub = max(8, 32 // itemsize)  # sublane pack: 8 rows f32, 16 bf16, 32 int8
    tr = _pick_tile_rows(R, sub, D * itemsize)
    grid = (pl.cdiv(R, tr),)

    y2 = pl.pallas_call(
        _affine_kernel,
        out_shape=jax.ShapeDtypeStruct((R, D), out_dtype),
        grid_spec=pltpu.PrefetchScalarGridSpec(
            num_scalar_prefetch=0,
            grid=grid,
            in_specs=[
                # parameters: same (full) block every grid step -> fetched once
                pl.BlockSpec((1, D), lambda i: (0, 0)),
                pl.BlockSpec((1, D), lambda i: (0, 0)),
                # activations: one row-tile per grid step
                pl.BlockSpec((tr, D), lambda i: (i, 0)),
            ],
            out_specs=pl.BlockSpec((tr, D), lambda i: (i, 0)),
        ),
        compiler_params=pltpu.CompilerParams(
            # Megacore-shards the row-tile loop on v7x (see TODO above).
            dimension_semantics=("parallel",),
            vmem_limit_bytes=_VMEM_LIMIT_BYTES,
        ),
    )(a2, b2, x2)

    return y2.reshape(B, N, D)


if __name__ == "__main__":
    key = jax.random.PRNGKey(0)
    kx, ka, kb, kx2 = jax.random.split(key, 4)

    # --- Test 1: f32, D=32 (minor dim < 128: masked-store path) ------------
    B, N, D = 2, 8, 32
    x = jax.random.normal(kx, (B, N, D), dtype=jnp.float32)
    alpha = 1.0 + 0.1 * jax.random.normal(ka, (1, 1, D), dtype=jnp.float32)
    beta = 0.1 * jax.random.normal(kb, (1, 1, D), dtype=jnp.float32)

    y = jax.block_until_ready(affine(x, alpha, beta))
    ref = beta + alpha * x
    assert y.shape == x.shape and y.dtype == x.dtype
    assert jnp.allclose(y, ref, atol=1e-6, rtol=1e-6)

    # Default-initialized parameters (Affine.__init__): identity map.
    alpha0 = jnp.ones((1, 1, D), dtype=jnp.float32)
    beta0 = jnp.zeros((1, 1, D), dtype=jnp.float32)
    y0 = jax.block_until_ready(affine(x, alpha0, beta0))
    assert jnp.allclose(y0, x, atol=1e-6, rtol=1e-6)

    # --- Test 2: f32, D=96 with an odd row count ----------------------------
    B2, N2, D2 = 2, 5, 96
    xb = jax.random.normal(kx2, (B2, N2, D2), dtype=jnp.float32)
    ab = 1.0 + 0.1 * jax.random.normal(ka, (1, 1, D2), dtype=jnp.float32)
    bb = 0.1 * jax.random.normal(kb, (1, 1, D2), dtype=jnp.float32)
    yb = jax.block_until_ready(affine(xb, ab, bb))
    refb = bb + ab * xb
    assert jnp.allclose(yb, refb, atol=1e-6, rtol=1e-6)

    # --- Test 3: mixed precision (bf16 activations, f32 params) ------------
    # Params are pre-cast to bf16 inside the wrapper (per perf review), so the
    # result matches the f32-param reference within bf16 tolerance.
    x16 = x.astype(jnp.bfloat16)
    y16 = jax.block_until_ready(affine(x16, alpha, beta))
    ref16 = (beta + alpha * x16.astype(jnp.float32)).astype(jnp.bfloat16)
    assert y16.dtype == jnp.bfloat16
    assert jnp.allclose(y16.astype(jnp.float32), ref16.astype(jnp.float32),
                        atol=2e-2, rtol=2e-2)

    print("KERNEL_OK")
</pallas_src>

<mosaic_0001>
module attributes {stable_mosaic.version = 11 : i64} {
  func.func @_affine_kernel(%arg0: i32, %arg1: memref<1x32xf32, #tpu.memory_space<vmem>>, %arg2: memref<1x32xf32, #tpu.memory_space<vmem>>, %arg3: memref<16x32xf32, #tpu.memory_space<vmem>>, %arg4: memref<16x32xf32, #tpu.memory_space<vmem>>) attributes {dimension_semantics = [#tpu.dimension_semantics<parallel>], iteration_bounds = array<i64: 1>, scalar_prefetch = 0 : i64, scratch_operands = 0 : i64, tpu.core_type = #tpu.core_type<tc>, window_params = [{pipeline_mode = #tpu.pipeline_mode<synchronous>, transform_indices = @transform_0, window_bounds = array<i64: 1, 32>}, {pipeline_mode = #tpu.pipeline_mode<synchronous>, transform_indices = @transform_1, window_bounds = array<i64: 1, 32>}, {transform_indices = @transform_2, window_bounds = array<i64: 16, 32>}, {transform_indices = @transform_3, window_bounds = array<i64: 16, 32>}]} {
    %c0 = arith.constant 0 : index
    %c0_0 = arith.constant 0 : index
    %0 = vector.load %arg2[%c0, %c0_0] : memref<1x32xf32, #tpu.memory_space<vmem>>, vector<1x32xf32>
    %c0_1 = arith.constant 0 : index
    %c0_2 = arith.constant 0 : index
    %1 = vector.load %arg1[%c0_1, %c0_2] : memref<1x32xf32, #tpu.memory_space<vmem>>, vector<1x32xf32>
    %c0_3 = arith.constant 0 : index
    %c0_4 = arith.constant 0 : index
    %2 = vector.load %arg3[%c0_3, %c0_4] : memref<16x32xf32, #tpu.memory_space<vmem>>, vector<16x32xf32>
    %3 = vector.broadcast %1 : vector<1x32xf32> to vector<16x32xf32>
    %4 = arith.mulf %3, %2 : vector<16x32xf32>
    %5 = vector.broadcast %0 : vector<1x32xf32> to vector<16x32xf32>
    %6 = arith.addf %5, %4 : vector<16x32xf32>
    %c0_5 = arith.constant 0 : index
    %c0_6 = arith.constant 0 : index
    %7 = vector.load %arg4[%c0_5, %c0_6] : memref<16x32xf32, #tpu.memory_space<vmem>>, vector<16x32xf32>
    tpu.vector_store %arg4[%c0_5, %c0_6], %6 {strides = array<i32>} : memref<16x32xf32, #tpu.memory_space<vmem>>, vector<16x32xf32>,
    return
  }
  func.func @transform_0(%arg0: i32) -> (i32, i32) {
    %c0_i32 = arith.constant 0 : i32
    %c0_i32_0 = arith.constant 0 : i32
    %c0_i32_1 = arith.constant 0 : i32
    return %c0_i32, %c0_i32_0 : i32, i32
  }
  func.func @transform_1(%arg0: i32) -> (i32, i32) {
    %c0_i32 = arith.constant 0 : i32
    %c0_i32_0 = arith.constant 0 : i32
    %c0_i32_1 = arith.constant 0 : i32
    return %c0_i32, %c0_i32_0 : i32, i32
  }
  func.func @transform_2(%arg0: i32) -> (i32, i32) {
    %c0_i32 = arith.constant 0 : i32
    %c0_i32_0 = arith.constant 0 : i32
    return %arg0, %c0_i32 : i32, i32
  }
  func.func @transform_3(%arg0: i32) -> (i32, i32) {
    %c0_i32 = arith.constant 0 : i32
    %c0_i32_0 = arith.constant 0 : i32
    return %arg0, %c0_i32 : i32, i32
  }
}

</mosaic_0001>

<llo_original>
// kernel: tpu_custom_call.1
$region0: #{tpu_custom_call.1}
  #allocation0 [shape = 'u32[]', space=smem, size = 0x4, offset = 0x4, fixed_abs, tag = 'smem constant byte address 0x4 - core index']
  #allocation1 [shape = 'u32[144,128]{1,0:T(1,128)}', space=vmem, size = 0x12000, scoped, tag = 'internal scratch']
  %s0 = inlined_call_operand.hbm [shape: f32[1,32], index: 0, kind: input, shape index: {}]
  %s1 = inlined_call_operand.vmem [shape: f32[1,32], index: 1, kind: input, shape index: {}]
  %s2 = inlined_call_operand.hbm [shape: f32[16,32], index: 2, kind: input, shape index: {}]
  %s3 = inlined_call_operand.hbm [shape: f32[16,32], index: 3, kind: output, shape index: {}]
  %s4 = sld [smem:[#allocation0]]
  $region30: #{tpu_custom_call.1} parent=0
    _
  %s6 = ssub.s32 1, %s4
  %s7 = scalar_select 0, %s6, %s4
  $region1: #{tpu_custom_call.1} parent=0
    #allocation2 [shape = 'u8[512]{0}', space=vmem, size = 0x400, scoped, tag = 'input window, operand 0, single buffered']
    #allocation3 [shape = 's32[1]{0}', space=sflag, size = 0x4, scoped, tag = 'scoped memory for tpu_custom_call.1']
    #allocation4 [shape = 's32[1]{0}', space=sflag, size = 0x4, scoped, tag = 'scoped memory for tpu_custom_call.1']
    #allocation5 [shape = 'u8[8192]{0}', space=vmem, size = 0x2000, scoped, tag = 'input window, operand 2, single buffered']
    #allocation6 [shape = 's32[1]{0}', space=sflag, size = 0x4, scoped, tag = 'scoped memory for tpu_custom_call.1']
    #allocation7 [shape = 'u8[8192]{0}', space=vmem, size = 0x2000, scoped, tag = 'output window, operand 0, single buffered']
    %8 = vsyncpa [#allocation3], 0
    %9 = vsyncpa [#allocation6], 0
    %10 = vsyncpa [#allocation4], 0
    // Predicated region
    $region2: #{tpu_custom_call.1} parent=1 // pred_check
      _
    $region3: #{tpu_custom_call.1} parent=1 // pred_check_branch
      %12 = sbr.rel (0) target = $region5
    $region4: #{tpu_custom_call.1} parent=1 // pred_region
      %s14 = ssub.s32 16, 16
      %15 = vsyncadd [#allocation3], %s14
      %s17 = sshll.u32 [#allocation2], 4
      %s18 = int_to_ptr.vmem [resolvable:$true] %s17
      %20 = dma.hbm_to_vmem [thread:$0]  %s0, 16, %s18, [#allocation3]
    $region5: #{tpu_custom_call.1} parent=1 // pred_fallthru
      _
    // Predicated region
    $region6: #{tpu_custom_call.1} parent=1 // pred_check
      _
    $region7: #{tpu_custom_call.1} parent=1 // pred_check_branch
      %22 = sbr.rel (0) target = $region9
    $region8: #{tpu_custom_call.1} parent=1 // pred_region
      _
    $region9: #{tpu_custom_call.1} parent=1 // pred_fallthru
      _
    // Predicated region
    $region10: #{tpu_custom_call.1} parent=1 // pred_check
      _
    $region11: #{tpu_custom_call.1} parent=1 // pred_check_branch
      %24 = sbr.rel (0) target = $region13
    $region12: #{tpu_custom_call.1} parent=1 // pred_region
      %s26 = ssub.s32 256, 256
      %27 = vsyncadd [#allocation6], %s26
      %s28 = sshll.u32 [#allocation5], 4
      %s29 = int_to_ptr.vmem [resolvable:$true] %s28
      %34 = dma.hbm_to_vmem [thread:$0]  %s2, 256, %s29, [#allocation6], 128, 128, 8
    $region13: #{tpu_custom_call.1} parent=1 // pred_fallthru
      _
    // Predicated region
    $region14: #{tpu_custom_call.1} parent=1 // pred_check
      _
    $region15: #{tpu_custom_call.1} parent=1 // pred_check_branch
      %36 = sbr.rel (0) target = $region17
    $region16: #{tpu_custom_call.1} parent=1 // pred_region
      %37 = dma.done [#allocation3], 16
    $region17: #{tpu_custom_call.1} parent=1 // pred_fallthru
      _
    // Predicated region
    $region18: #{tpu_custom_call.1} parent=1 // pred_check
      _
    $region19: #{tpu_custom_call.1} parent=1 // pred_check_branch
      %39 = sbr.rel (0) target = $region21
    $region20: #{tpu_custom_call.1} parent=1 // pred_region
      %40 = dma.done [#allocation6], 256
    $region21: #{tpu_custom_call.1} parent=1 // pred_fallthru
      _
    %v41 = vld [vmem:[%s1] sm:$0x1]
    %v42 = vld [vmem:[#allocation2] sm:$0x1]
    %v43 = vld [vmem:[#allocation5] sm:$0xff]
    %v44 = vld [vmem:[#allocation5 + $0x8] sm:$0xff]
    %v46 = vlaneseq
    %v47 = vshrl.u32 %v46, 7
    %v48 = vsub.s32 0, %v47
    %v49 = vrot.slane %v42, %v48
    %v51 = vmul.f32 %v49, %v43
    %v52 = vmul.f32 %v49, %v44
    %v54 = vlaneseq
    %v55 = vshrl.u32 %v54, 7
    %v56 = vsub.s32 0, %v55
    %v57 = vrot.slane %v41, %v56
    %v59 = vadd.f32 %v57, %v51
    %v60 = vadd.f32 %v57, %v52
    %vm61 = vcmask 261120
    %62 = vst.msk [vmem:[#allocation7] sm:$0xff] %vm61, %v59
    %63 = vst.msk [vmem:[#allocation7 + $0x8] sm:$0xff] %vm61, %v60
    // Predicated region
    $region22: #{tpu_custom_call.1} parent=1 // pred_check
      _
    $region23: #{tpu_custom_call.1} parent=1 // pred_check_branch
      %65 = sbr.rel (0) target = $region25
    $region24: #{tpu_custom_call.1} parent=1 // pred_region
      %s67 = ssub.s32 256, 256
      %68 = vsyncadd [#allocation4], %s67
      %s69 = sshll.u32 [#allocation7], 4
      %s70 = int_to_ptr.vmem [resolvable:$true] %s69
      %75 = dma.vmem_to_hbm [thread:$0]  %s70, 256, %s3, [#allocation4], 128, 128, 8
    $region25: #{tpu_custom_call.1} parent=1 // pred_fallthru
      _
    // Predicated region
    $region26: #{tpu_custom_call.1} parent=1 // pred_check
      _
    $region27: #{tpu_custom_call.1} parent=1 // pred_check_branch
      %77 = sbr.rel (0) target = $region29
    $region28: #{tpu_custom_call.1} parent=1 // pred_region
      %78 = dma.done [#allocation4], 256
    $region29: #{tpu_custom_call.1} parent=1 // pred_fallthru
      _
    %79 = vsyncpa [#allocation3], 1
    %80 = vsyncpa [#allocation6], 1
    %81 = vsyncpa [#allocation4], 1

</llo_original>
